<compile_context>
chip_gen: v7x
topology: tpu7x:2x2x1
jax: 0.10.0
libtpu: 0.0.40
codegen_flags: <defaults>
</compile_context>

<pallas_src>
import jax
import jax.numpy as jnp
import numpy as np
from jax.experimental import pallas as pl
from jax.experimental.pallas import tpu as pltpu


def _round_up(n, m):
    return ((n + m - 1) // m) * m


def _choose_tb(bp):
    """Batch tile: <=1024 rows, and >=2 grid steps when possible (v7x 2 TCs)."""
    if bp <= 8:
        return bp
    half = _round_up((bp + 1) // 2, 8)
    return max(8, min(1024, half))


# ----------------------------- Pallas kernel --------------------------------
def _backbone_kernel(x_ref, v_ref, w1x_ref, w1v_ref, b1_ref, w2p_ref, b2_ref,
                     out_ref):
    # Layer 1: fused (w2 | w1 | w3) into the lane-padded hidden dim.
    h = jnp.dot(x_ref[...], w1x_ref[...], preferred_element_type=jnp.float32)
    h = h + jnp.dot(v_ref[...], w1v_ref[...],
                    preferred_element_type=jnp.float32)
    h = jnp.maximum(h + b1_ref[...], 0.0)            # f32 bias + ReLU (VPU)

    # Layer 2: fused (w5 | w4a ; w4b) -> [rx | rv] lanes.
    out = jnp.dot(h.astype(w2p_ref.dtype), w2p_ref[...],
                  preferred_element_type=jnp.float32)
    out = jnp.maximum(out + b2_ref[...], 0.0)        # f32 bias + ReLU
    out_ref[...] = out.astype(out_ref.dtype)


# ------------------------------ Wrapper --------------------------------------
def backbone_forward(x, v, packed, *, return_packed=False):
    """x: [B, x_dim], v: [B, v_dim + 3] -> (rx: [B, k], rv: [B, k]).

    If return_packed=True, returns the packed [Bp, Nout] slab instead
    (rx in lanes [0,k), rv in [k,2k)) so consumers can skip the slice pass.
    """
    B = x.shape[0]
    k, H1, Nout = packed["k"], packed["H1"], packed["Nout"]
    x_dim = packed["x_dim"]
    v_full = packed["v_dim"] + 3
    cdtype = packed["w1x"].dtype                       # compute/stream dtype

    xc = x.astype(cdtype)
    vc = v.astype(cdtype)

    # Pad batch only to the 8-row sublane granularity (no full-tile pad).
    Bp = _round_up(B, 8)
    if Bp != B:
        xc = jnp.pad(xc, ((0, Bp - B), (0, 0)))
        vc = jnp.pad(vc, ((0, Bp - B), (0, 0)))

    TB = _choose_tb(Bp)
    grid = (pl.cdiv(Bp, TB),)

    isz = jnp.dtype(cdtype).itemsize
    flops = 2 * Bp * ((x_dim + v_full) * H1 + H1 * Nout)
    bytes_accessed = isz * (Bp * (x_dim + v_full + Nout)
                            + (x_dim + v_full) * H1 + H1 * Nout) + 4 * (H1 + Nout)

    # Double-buffered activation/output tiles + resident weights; clamp so the
    # limit is valid on every generation (v7x scoped max ~64 MiB physical).
    vmem_est = (2 * TB * (x_dim + v_full) * isz
                + 2 * TB * Nout * isz
                + 2 * ((x_dim + v_full) * H1 + H1 * Nout) * isz
                + 2 * (H1 + Nout) * 4)
    vmem_limit = int(min(40 * 1024 * 1024,
                         max(16 * 1024 * 1024, 2 * vmem_est)))

    out = pl.pallas_call(
        _backbone_kernel,
        out_shape=jax.ShapeDtypeStruct((Bp, Nout), cdtype),
        grid=grid,
        in_specs=[
            pl.BlockSpec((TB, x_dim), lambda i: (i, 0)),     # x tile (streams)
            pl.BlockSpec((TB, v_full), lambda i: (i, 0)),    # v tile (streams)
            pl.BlockSpec((x_dim, H1), lambda i: (0, 0)),     # W1x (resident)
            pl.BlockSpec((v_full, H1), lambda i: (0, 0)),    # W1v (resident)
            pl.BlockSpec((1, H1), lambda i: (0, 0)),         # b1 row (f32)
            pl.BlockSpec((H1, Nout), lambda i: (0, 0)),      # W2p (resident)
            pl.BlockSpec((1, Nout), lambda i: (0, 0)),       # b2 row (f32)
        ],
        out_specs=pl.BlockSpec((TB, Nout), lambda i: (i, 0)),
        compiler_params=pltpu.CompilerParams(
            dimension_semantics=("parallel",),
            vmem_limit_bytes=vmem_limit),
        cost_estimate=pl.CostEstimate(
            flops=flops, transcendentals=0, bytes_accessed=bytes_accessed),
    )(xc, vc, packed["w1x"], packed["w1v"], packed["b1row"],
      packed["w2p"], packed["b2row"])

    if return_packed:
        return out
    rx = out[:B, 0:k]
    rv = out[:B, k:2 * k]
    return rx, rv


# ----------------------- Deterministic parameter init ------------------------
def init_params(key, x_dim, v_dim, r_dim):
    """Raw per-layer params, torch-Linear-like (weights stored [in, out])."""
    k = r_dim
    keys = jax.random.split(key, 10)

    def linear(kw, kb, fan_in, fan_out):
        bound = 1.0 / np.sqrt(fan_in)
        w = jax.random.uniform(kw, (fan_in, fan_out), jnp.float32, -bound, bound)
        b = jax.random.uniform(kb, (fan_out,), jnp.float32, -bound, bound)
        return w, b

    w1, b1 = linear(keys[0], keys[1], v_dim, k)      # linear1: v_dim -> k
    w2, b2 = linear(keys[2], keys[3], x_dim, k)      # linear2: x_dim -> k
    w3, b3 = linear(keys[4], keys[5], 3, k)          # linear3: 3 -> k
    w4, b4 = linear(keys[6], keys[7], 2 * k, k)      # linear4: 2k -> k
    w5, b5 = linear(keys[8], keys[9], k, k)          # linear5: k -> k

    return {
        "w1": w1, "b1": b1,
        "w2": w2, "b2": b2,
        "w3": w3, "b3": b3,
        "w4a": w4[:k, :], "w4b": w4[k:, :], "b4": b4,    # split concat-weight
        "w5": w5, "b5": b5,
    }


def pack_params(raw, x_dim, v_dim, k, *, lane=128, dtype=jnp.float32):
    """Build lane-padded packed weights; biases kept f32 (broadcast rows)."""
    v_full = v_dim + 3
    H1 = _round_up(3 * k, lane)            # [xh | v1 | v2 | pad]
    Nout = _round_up(2 * k, lane)          # [rx | rv | pad]

    w1x = np.zeros((x_dim, H1), np.float32)
    w1x[:, 0:k] = np.asarray(raw["w2"])                         # x      -> xh
    w1v = np.zeros((v_full, H1), np.float32)
    w1v[0:v_dim, k:2 * k] = np.asarray(raw["w1"])               # v_main -> v1
    w1v[v_dim:, 2 * k:3 * k] = np.asarray(raw["w3"])            # v_extra-> v2
    b1row = np.zeros((1, H1), np.float32)
    b1row[0, 0:k] = np.asarray(raw["b2"])
    b1row[0, k:2 * k] = np.asarray(raw["b1"])
    b1row[0, 2 * k:3 * k] = np.asarray(raw["b3"])

    w2p = np.zeros((H1, Nout), np.float32)
    w2p[0:k, 0:k] = np.asarray(raw["w5"])                       # rx  = xh @ w5
    w2p[k:2 * k, k:2 * k] = np.asarray(raw["w4a"])              # rv += v1 @ w4a
    w2p[2 * k:3 * k, k:2 * k] = np.asarray(raw["w4b"])          # rv += v2 @ w4b
    b2row = np.zeros((1, Nout), np.float32)
    b2row[0, 0:k] = np.asarray(raw["b5"])
    b2row[0, k:2 * k] = np.asarray(raw["b4"])

    return {
        "w1x": jnp.asarray(w1x, dtype), "w1v": jnp.asarray(w1v, dtype),
        "w2p": jnp.asarray(w2p, dtype),
        "b1row": jnp.asarray(b1row, jnp.float32),
        "b2row": jnp.asarray(b2row, jnp.float32),
        "k": k, "x_dim": x_dim, "v_dim": v_dim, "H1": H1, "Nout": Nout,
    }


# ------------------------------ Reference ------------------------------------
def backbone_ref(x, v, raw, v_dim):
    relu = lambda a: jnp.maximum(a, 0.0)
    v1 = relu(v[:, :v_dim] @ raw["w1"] + raw["b1"])
    xh = relu(x @ raw["w2"] + raw["b2"])
    v2 = relu(v[:, v_dim:] @ raw["w3"] + raw["b3"])
    rv = relu(v1 @ raw["w4a"] + v2 @ raw["w4b"] + raw["b4"])
    rx = relu(xh @ raw["w5"] + raw["b5"])
    return rx, rv


# -------------------------------- Main ----------------------------------------
if __name__ == "__main__":
    B, X_DIM, V_DIM, R_DIM = 8, 16, 4, 32

    key = jax.random.PRNGKey(0)
    kx, kv, kp = jax.random.split(key, 3)

    x = jax.random.normal(kx, (B, X_DIM), jnp.float32)
    v = jax.random.normal(kv, (B, V_DIM + 3), jnp.float32)

    raw = init_params(kp, X_DIM, V_DIM, R_DIM)
    rx_ref, rv_ref = backbone_ref(x, v, raw, V_DIM)

    # --- f32 path (exact check) ---
    packed_f32 = pack_params(raw, X_DIM, V_DIM, R_DIM, dtype=jnp.float32)
    rx, rv = backbone_forward(x, v, packed_f32)
    jax.block_until_ready((rx, rv))
    np.testing.assert_allclose(np.asarray(rx), np.asarray(rx_ref),
                               rtol=1e-5, atol=1e-5)
    np.testing.assert_allclose(np.asarray(rv), np.asarray(rv_ref),
                               rtol=1e-5, atol=1e-5)

    # --- bf16 operand path (v6e/v7x: half the HBM stream, bf16 MXU) ---
    packed_bf16 = pack_params(raw, X_DIM, V_DIM, R_DIM, dtype=jnp.bfloat16)
    rx_b, rv_b = backbone_forward(x, v, packed_bf16)
    jax.block_until_ready((rx_b, rv_b))
    np.testing.assert_allclose(np.asarray(rx_b.astype(jnp.float32)),
                               np.asarray(rx_ref), rtol=5e-2, atol=5e-2)
    np.testing.assert_allclose(np.asarray(rv_b.astype(jnp.float32)),
                               np.asarray(rv_ref), rtol=5e-2, atol=5e-2)

    print("KERNEL_OK")
</pallas_src>

<mosaic_0001>
module attributes {stable_mosaic.version = 11 : i64} {
  func.func @_backbone_kernel(%arg0: i32, %arg1: memref<8x16xf32, #tpu.memory_space<vmem>>, %arg2: memref<8x7xf32, #tpu.memory_space<vmem>>, %arg3: memref<16x128xf32, #tpu.memory_space<vmem>>, %arg4: memref<7x128xf32, #tpu.memory_space<vmem>>, %arg5: memref<1x128xf32, #tpu.memory_space<vmem>>, %arg6: memref<128x128xf32, #tpu.memory_space<vmem>>, %arg7: memref<1x128xf32, #tpu.memory_space<vmem>>, %arg8: memref<8x128xf32, #tpu.memory_space<vmem>>) attributes {dimension_semantics = [#tpu.dimension_semantics<parallel>], iteration_bounds = array<i64: 1>, scalar_prefetch = 0 : i64, scratch_operands = 0 : i64, tpu.core_type = #tpu.core_type<tc>, window_params = [{transform_indices = @transform_0, window_bounds = array<i64: 8, 16>}, {transform_indices = @transform_1, window_bounds = array<i64: 8, 7>}, {pipeline_mode = #tpu.pipeline_mode<synchronous>, transform_indices = @transform_2, window_bounds = array<i64: 16, 128>}, {pipeline_mode = #tpu.pipeline_mode<synchronous>, transform_indices = @transform_3, window_bounds = array<i64: 7, 128>}, {pipeline_mode = #tpu.pipeline_mode<synchronous>, transform_indices = @transform_4, window_bounds = array<i64: 1, 128>}, {pipeline_mode = #tpu.pipeline_mode<synchronous>, transform_indices = @transform_5, window_bounds = array<i64: 128, 128>}, {pipeline_mode = #tpu.pipeline_mode<synchronous>, transform_indices = @transform_6, window_bounds = array<i64: 1, 128>}, {transform_indices = @transform_7, window_bounds = array<i64: 8, 128>}]} {
    %c0 = arith.constant 0 : index
    %c0_0 = arith.constant 0 : index
    %0 = vector.load %arg1[%c0, %c0_0] : memref<8x16xf32, #tpu.memory_space<vmem>>, vector<8x16xf32>
    %c0_1 = arith.constant 0 : index
    %c0_2 = arith.constant 0 : index
    %1 = vector.load %arg3[%c0_1, %c0_2] : memref<16x128xf32, #tpu.memory_space<vmem>>, vector<16x128xf32>
    %cst = arith.constant dense<0.000000e+00> : vector<8x128xf32>
    %2 = tpu.matmul %0, %1, %cst {dimension_numbers = #tpu.dot_dimension_numbers<[1], [0], [0], [1], [0, 0, 1, 1], [], []>} : vector<8x16xf32>, vector<16x128xf32>, vector<8x128xf32> -> vector<8x128xf32>
    %c0_3 = arith.constant 0 : index
    %c0_4 = arith.constant 0 : index
    %3 = vector.load %arg2[%c0_3, %c0_4] : memref<8x7xf32, #tpu.memory_space<vmem>>, vector<8x7xf32>
    %c0_5 = arith.constant 0 : index
    %c0_6 = arith.constant 0 : index
    %4 = vector.load %arg4[%c0_5, %c0_6] : memref<7x128xf32, #tpu.memory_space<vmem>>, vector<7x128xf32>
    %cst_7 = arith.constant dense<0.000000e+00> : vector<8x128xf32>
    %5 = tpu.matmul %3, %4, %cst_7 {dimension_numbers = #tpu.dot_dimension_numbers<[1], [0], [0], [1], [0, 0, 1, 1], [], []>} : vector<8x7xf32>, vector<7x128xf32>, vector<8x128xf32> -> vector<8x128xf32>
    %6 = arith.addf %2, %5 : vector<8x128xf32>
    %c0_8 = arith.constant 0 : index
    %c0_9 = arith.constant 0 : index
    %7 = vector.load %arg5[%c0_8, %c0_9] : memref<1x128xf32, #tpu.memory_space<vmem>>, vector<1x128xf32>
    %8 = vector.broadcast %7 : vector<1x128xf32> to vector<8x128xf32>
    %9 = arith.addf %6, %8 : vector<8x128xf32>
    %cst_10 = arith.constant 0.000000e+00 : f32
    %10 = vector.broadcast %cst_10 : f32 to vector<8x128xf32>
    %11 = arith.maximumf %9, %10 : vector<8x128xf32>
    %c0_11 = arith.constant 0 : index
    %c0_12 = arith.constant 0 : index
    %12 = vector.load %arg6[%c0_11, %c0_12] : memref<128x128xf32, #tpu.memory_space<vmem>>, vector<128x128xf32>
    %cst_13 = arith.constant dense<0.000000e+00> : vector<8x128xf32>
    %13 = tpu.matmul %11, %12, %cst_13 {dimension_numbers = #tpu.dot_dimension_numbers<[1], [0], [0], [1], [0, 0, 1, 1], [], []>} : vector<8x128xf32>, vector<128x128xf32>, vector<8x128xf32> -> vector<8x128xf32>
    %c0_14 = arith.constant 0 : index
    %c0_15 = arith.constant 0 : index
    %14 = vector.load %arg7[%c0_14, %c0_15] : memref<1x128xf32, #tpu.memory_space<vmem>>, vector<1x128xf32>
    %15 = vector.broadcast %14 : vector<1x128xf32> to vector<8x128xf32>
    %16 = arith.addf %13, %15 : vector<8x128xf32>
    %cst_16 = arith.constant 0.000000e+00 : f32
    %17 = vector.broadcast %cst_16 : f32 to vector<8x128xf32>
    %18 = arith.maximumf %16, %17 : vector<8x128xf32>
    %c0_17 = arith.constant 0 : index
    %c0_18 = arith.constant 0 : index
    %19 = vector.load %arg8[%c0_17, %c0_18] : memref<8x128xf32, #tpu.memory_space<vmem>>, vector<8x128xf32>
    tpu.vector_store %arg8[%c0_17, %c0_18], %18 {strides = array<i32>} : memref<8x128xf32, #tpu.memory_space<vmem>>, vector<8x128xf32>,
    return
  }
  func.func @transform_0(%arg0: i32) -> (i32, i32) {
    %c0_i32 = arith.constant 0 : i32
    %c0_i32_0 = arith.constant 0 : i32
    return %arg0, %c0_i32 : i32, i32
  }
  func.func @transform_1(%arg0: i32) -> (i32, i32) {
    %c0_i32 = arith.constant 0 : i32
    %c0_i32_0 = arith.constant 0 : i32
    return %arg0, %c0_i32 : i32, i32
  }
  func.func @transform_2(%arg0: i32) -> (i32, i32) {
    %c0_i32 = arith.constant 0 : i32
    %c0_i32_0 = arith.constant 0 : i32
    %c0_i32_1 = arith.constant 0 : i32
    return %c0_i32, %c0_i32_0 : i32, i32
  }
  func.func @transform_3(%arg0: i32) -> (i32, i32) {
    %c0_i32 = arith.constant 0 : i32
    %c0_i32_0 = arith.constant 0 : i32
    %c0_i32_1 = arith.constant 0 : i32
    return %c0_i32, %c0_i32_0 : i32, i32
  }
  func.func @transform_4(%arg0: i32) -> (i32, i32) {
    %c0_i32 = arith.constant 0 : i32
    %c0_i32_0 = arith.constant 0 : i32
    %c0_i32_1 = arith.constant 0 : i32
    return %c0_i32, %c0_i32_0 : i32, i32
  }
  func.func @transform_5(%arg0: i32) -> (i32, i32) {
    %c0_i32 = arith.constant 0 : i32
    %c0_i32_0 = arith.constant 0 : i32
    %c0_i32_1 = arith.constant 0 : i32
    return %c0_i32, %c0_i32_0 : i32, i32
  }
  func.func @transform_6(%arg0: i32) -> (i32, i32) {
    %c0_i32 = arith.constant 0 : i32
    %c0_i32_0 = arith.constant 0 : i32
    %c0_i32_1 = arith.constant 0 : i32
    return %c0_i32, %c0_i32_0 : i32, i32
  }
  func.func @transform_7(%arg0: i32) -> (i32, i32) {
    %c0_i32 = arith.constant 0 : i32
    %c0_i32_0 = arith.constant 0 : i32
    return %arg0, %c0_i32 : i32, i32
  }
}

</mosaic_0001>

<llo_original>
// kernel: tpu_custom_call.1
$region0: #{tpu_custom_call.1}
  #allocation0 [shape = 'u32[]', space=smem, size = 0x4, offset = 0x4, fixed_abs, tag = 'smem constant byte address 0x4 - core index']
  #allocation1 [shape = 'u32[144,128]{1,0:T(1,128)}', space=vmem, size = 0x12000, scoped, tag = 'internal scratch']
  %s0 = inlined_call_operand.hbm [shape: f32[8,16], index: 0, kind: input, shape index: {}]
  %s1 = inlined_call_operand.hbm [shape: f32[8,7], index: 1, kind: input, shape index: {}]
  %s2 = inlined_call_operand.hbm [shape: f32[16,128], index: 2, kind: input, shape index: {}]
  %s3 = inlined_call_operand.vmem [shape: f32[7,128], index: 3, kind: input, shape index: {}]
  %s4 = inlined_call_operand.vmem [shape: f32[1,128], index: 4, kind: input, shape index: {}]
  %s5 = inlined_call_operand.hbm [shape: f32[128,128], index: 5, kind: input, shape index: {}]
  %s6 = inlined_call_operand.vmem [shape: f32[1,128], index: 6, kind: input, shape index: {}]
  %s7 = inlined_call_operand.hbm [shape: f32[8,128], index: 7, kind: output, shape index: {}]
  %s8 = sld [smem:[#allocation0]]
  $region54: #{tpu_custom_call.1} parent=0
    _
  %s10 = ssub.s32 1, %s8
  %s11 = scalar_select 0, %s10, %s8
  $region1: #{tpu_custom_call.1} parent=0
    #allocation2 [shape = 'u8[4096]{0}', space=vmem, size = 0x1000, scoped, tag = 'input window, operand 0, single buffered']
    #allocation3 [shape = 's32[1]{0}', space=sflag, size = 0x4, scoped, tag = 'scoped memory for tpu_custom_call.1']
    #allocation4 [shape = 's32[1]{0}', space=sflag, size = 0x4, scoped, tag = 'scoped memory for tpu_custom_call.1']
    #allocation5 [shape = 'u8[4096]{0}', space=vmem, size = 0x1000, scoped, tag = 'input window, operand 1, single buffered']
    #allocation6 [shape = 's32[1]{0}', space=sflag, size = 0x4, scoped, tag = 'scoped memory for tpu_custom_call.1']
    #allocation7 [shape = 'u8[8192]{0}', space=vmem, size = 0x2000, scoped, tag = 'input window, operand 2, single buffered']
    #allocation8 [shape = 'u8[65536]{0}', space=vmem, size = 0x10000, scoped, tag = 'input window, operand 5, single buffered']
    #allocation9 [shape = 's32[1]{0}', space=sflag, size = 0x4, scoped, tag = 'scoped memory for tpu_custom_call.1']
    #allocation10 [shape = 'u8[4096]{0}', space=vmem, size = 0x1000, scoped, tag = 'output window, operand 0, single buffered']
    %12 = vsyncpa [#allocation3], 0
    %13 = vsyncpa [#allocation6], 0
    %14 = vsyncpa [#allocation9], 0
    %15 = vsyncpa [#allocation4], 0
    // Predicated region
    $region2: #{tpu_custom_call.1} parent=1 // pred_check
      _
    $region3: #{tpu_custom_call.1} parent=1 // pred_check_branch
      %17 = sbr.rel (0) target = $region5
    $region4: #{tpu_custom_call.1} parent=1 // pred_region
      %s19 = ssub.s32 128, 128
      %20 = vsyncadd [#allocation3], %s19
      %s22 = sshll.u32 [#allocation2], 4
      %s23 = int_to_ptr.vmem [resolvable:$true] %s22
      %25 = dma.hbm_to_vmem [thread:$0]  %s0, 128, %s23, [#allocation3]
    $region5: #{tpu_custom_call.1} parent=1 // pred_fallthru
      _
    // Predicated region
    $region6: #{tpu_custom_call.1} parent=1 // pred_check
      _
    $region7: #{tpu_custom_call.1} parent=1 // pred_check_branch
      %27 = sbr.rel (0) target = $region9
    $region8: #{tpu_custom_call.1} parent=1 // pred_region
      %s29 = ssub.s32 128, 128
      %30 = vsyncadd [#allocation6], %s29
      %s32 = sshll.u32 [#allocation5], 4
      %s33 = int_to_ptr.vmem [resolvable:$true] %s32
      %35 = dma.hbm_to_vmem [thread:$0]  %s1, 128, %s33, [#allocation6]
    $region9: #{tpu_custom_call.1} parent=1 // pred_fallthru
      _
    // Predicated region
    $region10: #{tpu_custom_call.1} parent=1 // pred_check
      _
    $region11: #{tpu_custom_call.1} parent=1 // pred_check_branch
      %37 = sbr.rel (0) target = $region13
    $region12: #{tpu_custom_call.1} parent=1 // pred_region
      %s39 = ssub.s32 256, 256
      %40 = vsyncadd [#allocation6], %s39
      %s41 = sshll.u32 [#allocation7], 4
      %s42 = int_to_ptr.vmem [resolvable:$true] %s41
      %47 = dma.hbm_to_vmem [thread:$0]  %s2, 256, %s42, [#allocation6], 128, 128, 8
    $region13: #{tpu_custom_call.1} parent=1 // pred_fallthru
      _
    // Predicated region
    $region14: #{tpu_custom_call.1} parent=1 // pred_check
      _
    $region15: #{tpu_custom_call.1} parent=1 // pred_check_branch
      %49 = sbr.rel (0) target = $region17
    $region16: #{tpu_custom_call.1} parent=1 // pred_region
      _
    $region17: #{tpu_custom_call.1} parent=1 // pred_fallthru
      _
    // Predicated region
    $region18: #{tpu_custom_call.1} parent=1 // pred_check
      _
    $region19: #{tpu_custom_call.1} parent=1 // pred_check_branch
      %51 = sbr.rel (0) target = $region21
    $region20: #{tpu_custom_call.1} parent=1 // pred_region
      _
    $region21: #{tpu_custom_call.1} parent=1 // pred_fallthru
      _
    // Predicated region
    $region22: #{tpu_custom_call.1} parent=1 // pred_check
      _
    $region23: #{tpu_custom_call.1} parent=1 // pred_check_branch
      %53 = sbr.rel (0) target = $region25
    $region24: #{tpu_custom_call.1} parent=1 // pred_region
      %s55 = ssub.s32 2048, 2048
      %56 = vsyncadd [#allocation9], %s55
      %s57 = sshll.u32 [#allocation8], 4
      %s58 = int_to_ptr.vmem [resolvable:$true] %s57
      %63 = dma.hbm_to_vmem [thread:$0]  %s5, 2048, %s58, [#allocation9], 128, 128, 8
    $region25: #{tpu_custom_call.1} parent=1 // pred_fallthru
      _
    // Predicated region
    $region26: #{tpu_custom_call.1} parent=1 // pred_check
      _
    $region27: #{tpu_custom_call.1} parent=1 // pred_check_branch
      %65 = sbr.rel (0) target = $region29
    $region28: #{tpu_custom_call.1} parent=1 // pred_region
      _
    $region29: #{tpu_custom_call.1} parent=1 // pred_fallthru
      _
    // Predicated region
    $region30: #{tpu_custom_call.1} parent=1 // pred_check
      _
    $region31: #{tpu_custom_call.1} parent=1 // pred_check_branch
      %67 = sbr.rel (0) target = $region33
    $region32: #{tpu_custom_call.1} parent=1 // pred_region
      %68 = dma.done [#allocation3], 128
    $region33: #{tpu_custom_call.1} parent=1 // pred_fallthru
      _
    // Predicated region
    $region34: #{tpu_custom_call.1} parent=1 // pred_check
      _
    $region35: #{tpu_custom_call.1} parent=1 // pred_check_branch
      %70 = sbr.rel (0) target = $region37
    $region36: #{tpu_custom_call.1} parent=1 // pred_region
      %71 = dma.done [#allocation6], 128
    $region37: #{tpu_custom_call.1} parent=1 // pred_fallthru
      _
    // Predicated region
    $region38: #{tpu_custom_call.1} parent=1 // pred_check
      _
    $region39: #{tpu_custom_call.1} parent=1 // pred_check_branch
      %73 = sbr.rel (0) target = $region41
    $region40: #{tpu_custom_call.1} parent=1 // pred_region
      %74 = dma.done [#allocation6], 256
    $region41: #{tpu_custom_call.1} parent=1 // pred_fallthru
      _
    // Predicated region
    $region42: #{tpu_custom_call.1} parent=1 // pred_check
      _
    $region43: #{tpu_custom_call.1} parent=1 // pred_check_branch
      %76 = sbr.rel (0) target = $region45
    $region44: #{tpu_custom_call.1} parent=1 // pred_region
      %77 = dma.done [#allocation9], 2048
    $region45: #{tpu_custom_call.1} parent=1 // pred_fallthru
      _
    %v78 = vld [vmem:[#allocation2] sm:$0xff]
    %v79 = vld [vmem:[#allocation7] sm:$0xff]
    %v80 = vld [vmem:[#allocation7 + $0x8] sm:$0xff]
    %v81 = vld [vmem:[#allocation5] sm:$0xff]
    %v82 = vld [vmem:[%s3] sm:$0x7f]
    %vm83 = vcmask 56320
    %v85 = vsel %vm83, %v81, 0
    %vm87 = vcmask 1046528
    %v89 = vsel %vm87, %v82, 0
    %91 = vmatprep.subr.mxu0 0.0
    %92 = vmatpush1.msra.mxu0 %v89
    %93 = vmatprep.subr.mxu0 0.0
    %94 = vmatpush1.msra.mxu0 0.0
    %95 = vmatprep.subr.mxu0 0.0
    %96 = vmatpush1.msra.mxu0 0.0
    %97 = vmatprep.subr.mxu0 0.0
    %98 = vmatpush1.msra.mxu0 0.0
    %99 = vmatprep.subr.mxu0 0.0
    %100 = vmatpush1.msra.mxu0 0.0
    %101 = vmatprep.subr.mxu0 0.0
    %102 = vmatpush1.msra.mxu0 0.0
    %103 = vmatprep.subr.mxu0 0.0
    %104 = vmatpush1.msra.mxu0 0.0
    %105 = vmatprep.subr.mxu0 0.0
    %106 = vmatpush1.msra.mxu0 0.0
    %107 = vmatprep.subr.mxu0 0.0
    %108 = vmatpush1.msra.mxu0 0.0
    %109 = vmatprep.subr.mxu0 0.0
    %110 = vmatpush1.msra.mxu0 0.0
    %111 = vmatprep.subr.mxu0 0.0
    %112 = vmatpush1.msra.mxu0 0.0
    %113 = vmatprep.subr.mxu0 0.0
    %114 = vmatpush1.msra.mxu0 0.0
    %115 = vmatprep.subr.mxu0 0.0
    %116 = vmatpush1.msra.mxu0 0.0
    %117 = vmatprep.subr.mxu0 0.0
    %118 = vmatpush1.msra.mxu0 0.0
    %119 = vmatprep.subr.mxu0 0.0
    %120 = vmatpush1.msra.mxu0 0.0
    %121 = vmatprep.subr.mxu0 0.0
    %122 = vmatpush1.msra.mxu0 0.0
    %123 = vmatprep.subr.mxu0 0.0
    %124 = vmatpush1.msra.mxu0 0.0
    %125 = vmatprep.subr.mxu0 0.0
    %126 = vmatpush1.msra.mxu0 0.0
    %127 = vmatprep.subr.mxu0 0.0
    %128 = vmatpush1.msra.mxu0 0.0
    %129 = vmatprep.subr.mxu0 0.0
    %130 = vmatpush1.msra.mxu0 0.0
    %131 = vmatprep.subr.mxu0 0.0
    %132 = vmatpush1.msra.mxu0 0.0
    %133 = vmatprep.subr.mxu0 0.0
    %134 = vmatpush1.msra.mxu0 0.0
    %135 = vmatprep.subr.mxu0 0.0
    %136 = vmatpush1.msra.mxu0 0.0
    %137 = vmatprep.subr.mxu0 0.0
    %138 = vmatpush1.msra.mxu0 0.0
    %139 = vmatprep.subr.mxu0 0.0
    %140 = vmatpush1.msra.mxu0 0.0
    %141 = vmatprep.subr.mxu0 0.0
    %142 = vmatpush1.msra.mxu0 0.0
    %143 = vmatprep.subr.mxu0 0.0
    %144 = vmatpush1.msra.mxu0 0.0
    %145 = vmatprep.subr.mxu0 0.0
    %146 = vmatpush1.msra.mxu0 0.0
    %147 = vmatprep.subr.mxu0 0.0
    %148 = vmatpush1.msra.mxu0 0.0
    %149 = vmatprep.subr.mxu0 0.0
    %150 = vmatpush1.msra.mxu0 0.0
    %151 = vmatprep.subr.mxu0 0.0
    %152 = vmatpush1.msra.mxu0 0.0
    %153 = vmatprep.subr.mxu0 0.0
    %154 = vmatpush1.msra.mxu0 0.0
    %155 = vmatprep.mubr.f32.mxu0 0.0
    %156 = vmatmul.mubr.f32.gmra.mrb[0].mxu0 %v85
    %v157 = vpop.f32.mrb[0].mxu0
    %v158 = vadd.f32 0.0, %v157
    %v159 = vpop.f32.mrb[0].mxu0
    %160 = vdwg.mxu0
    %vm161 = vcmask 130048
    %v163 = vsel %vm161, %v78, 0
    %165 = vmatprep.subr.mxu0 0.0
    %166 = vmatpush1.msra.mxu0 %v79
    %167 = vmatprep.subr.mxu0 0.0
    %168 = vmatpush1.msra.mxu0 %v80
    %169 = vmatprep.subr.mxu0 0.0
    %170 = vmatpush1.msra.mxu0 0.0
    %171 = vmatprep.subr.mxu0 0.0
    %172 = vmatpush1.msra.mxu0 0.0
    %173 = vmatprep.subr.mxu0 0.0
    %174 = vmatpush1.msra.mxu0 0.0
    %175 = vmatprep.subr.mxu0 0.0
    %176 = vmatpush1.msra.mxu0 0.0
    %177 = vmatprep.subr.mxu0 0.0
    %178 = vmatpush1.msra.mxu0 0.0
    %179 = vmatprep.subr.mxu0 0.0
    %180 = vmatpush1.msra.mxu0 0.0
    %181 = vmatprep.subr.mxu0 0.0
    %182 = vmatpush1.msra.mxu0 0.0
    %183 = vmatprep.subr.mxu0 0.0
    %184 = vmatpush1.msra.mxu0 0.0
    %185 = vmatprep.subr.mxu0 0.0
    %186 = vmatpush1.msra.mxu0 0.0
    %187 = vmatprep.subr.mxu0 0.0
    %188 = vmatpush1.msra.mxu0 0.0
    %189 = vmatprep.subr.mxu0 0.0
    %190 = vmatpush1.msra.mxu0 0.0
    %191 = vmatprep.subr.mxu0 0.0
    %192 = vmatpush1.msra.mxu0 0.0
    %193 = vmatprep.subr.mxu0 0.0
    %194 = vmatpush1.msra.mxu0 0.0
    %195 = vmatprep.subr.mxu0 0.0
    %196 = vmatpush1.msra.mxu0 0.0
    %197 = vmatprep.subr.mxu0 0.0
    %198 = vmatpush1.msra.mxu0 0.0
    %199 = vmatprep.subr.mxu0 0.0
    %200 = vmatpush1.msra.mxu0 0.0
    %201 = vmatprep.subr.mxu0 0.0
    %202 = vmatpush1.msra.mxu0 0.0
    %203 = vmatprep.subr.mxu0 0.0
    %204 = vmatpush1.msra.mxu0 0.0
    %205 = vmatprep.subr.mxu0 0.0
    %206 = vmatpush1.msra.mxu0 0.0
    %207 = vmatprep.subr.mxu0 0.0
    %208 = vmatpush1.msra.mxu0 0.0
    %209 = vmatprep.subr.mxu0 0.0
    %210 = vmatpush1.msra.mxu0 0.0
    %211 = vmatprep.subr.mxu0 0.0
    %212 = vmatpush1.msra.mxu0 0.0
    %213 = vmatprep.subr.mxu0 0.0
    %214 = vmatpush1.msra.mxu0 0.0
    %215 = vmatprep.subr.mxu0 0.0
    %216 = vmatpush1.msra.mxu0 0.0
    %217 = vmatprep.subr.mxu0 0.0
    %218 = vmatpush1.msra.mxu0 0.0
    %219 = vmatprep.subr.mxu0 0.0
    %220 = vmatpush1.msra.mxu0 0.0
    %221 = vmatprep.subr.mxu0 0.0
    %222 = vmatpush1.msra.mxu0 0.0
    %223 = vmatprep.subr.mxu0 0.0
    %224 = vmatpush1.msra.mxu0 0.0
    %225 = vmatprep.subr.mxu0 0.0
    %226 = vmatpush1.msra.mxu0 0.0
    %227 = vmatprep.subr.mxu0 0.0
    %228 = vmatpush1.msra.mxu0 0.0
    %229 = vmatprep.mubr.f32.mxu0 0.0
    %230 = vmatmul.mubr.f32.gmra.mrb[0].mxu0 %v163
    %v231 = vpop.f32.mrb[0].mxu0
    %v232 = vadd.f32 %v158, %v231
    %v233 = vpop.f32.mrb[0].mxu0
    %234 = vdwg.mxu0
    %v235 = vld [vmem:[%s4] sm:$0x1]
    %v237 = vlaneseq
    %v238 = vshrl.u32 %v237, 7
    %v239 = vsub.s32 0, %v238
    %v240 = vrot.slane %v235, %v239
    %v242 = vadd.f32 %v232, %v240
    %v243 = vmax.f32 %v242, 0.0
    %v244 = vld [vmem:[#allocation8] sm:$0xff]
    %v245 = vld [vmem:[#allocation8 + $0x8] sm:$0xff]
    %v246 = vld [vmem:[#allocation8 + $0x10] sm:$0xff]
    %v247 = vld [vmem:[#allocation8 + $0x18] sm:$0xff]
    %v248 = vld [vmem:[#allocation8 + $0x20] sm:$0xff]
    %v249 = vld [vmem:[#allocation8 + $0x28] sm:$0xff]
    %v250 = vld [vmem:[#allocation8 + $0x30] sm:$0xff]
    %v251 = vld [vmem:[#allocation8 + $0x38] sm:$0xff]
    %v252 = vld [vmem:[#allocation8 + $0x40] sm:$0xff]
    %v253 = vld [vmem:[#allocation8 + $0x48] sm:$0xff]
    %v254 = vld [vmem:[#allocation8 + $0x50] sm:$0xff]
    %v255 = vld [vmem:[#allocation8 + $0x58] sm:$0xff]
    %v256 = vld [vmem:[#allocation8 + $0x60] sm:$0xff]
    %v257 = vld [vmem:[#allocation8 + $0x68] sm:$0xff]
    %v258 = vld [vmem:[#allocation8 + $0x70] sm:$0xff]
    %v259 = vld [vmem:[#allocation8 + $0x78] sm:$0xff]
    %v260 = vld [vmem:[%s6] sm:$0x1]
    %v262 = vlaneseq
    %v263 = vshrl.u32 %v262, 7
    %v264 = vsub.s32 0, %v263
    %v265 = vrot.slane %v260, %v264
    %267 = vmatprep.subr.mxu0 0.0
    %268 = vmatpush1.msra.mxu0 %v244
    %269 = vmatprep.subr.mxu0 0.0
    %270 = vmatpush1.msra.mxu0 %v245
    %271 = vmatprep.subr.mxu0 0.0
    %272 = vmatpush1.msra.mxu0 %v246
    %273 = vmatprep.subr.mxu0 0.0
    %274 = vmatpush1.msra.mxu0 %v247
    %275 = vmatprep.subr.mxu0 0.0
    %276 = vmatpush1.msra.mxu0 %v248
    %277 = vmatprep.subr.mxu0 0.0
    %278 = vmatpush1.msra.mxu0 %v249
    %279 = vmatprep.subr.mxu0 0.0
    %280 = vmatpush1.msra.mxu0 %v250
    %281 = vmatprep.subr.mxu0 0.0
    %282 = vmatpush1.msra.mxu0 %v251
    %283 = vmatprep.subr.mxu0 0.0
    %284 = vmatpush1.msra.mxu0 %v252
    %285 = vmatprep.subr.mxu0 0.0
    %286 = vmatpush1.msra.mxu0 %v253
    %287 = vmatprep.subr.mxu0 0.0
    %288 = vmatpush1.msra.mxu0 %v254
    %289 = vmatprep.subr.mxu0 0.0
    %290 = vmatpush1.msra.mxu0 %v255
    %291 = vmatprep.subr.mxu0 0.0
    %292 = vmatpush1.msra.mxu0 %v256
    %293 = vmatprep.subr.mxu0 0.0
    %294 = vmatpush1.msra.mxu0 %v257
    %295 = vmatprep.subr.mxu0 0.0
    %296 = vmatpush1.msra.mxu0 %v258
    %297 = vmatprep.subr.mxu0 0.0
    %298 = vmatpush1.msra.mxu0 %v259
    %299 = vmatprep.subr.mxu0 0.0
    %300 = vmatpush1.msra.mxu0 0.0
    %301 = vmatprep.subr.mxu0 0.0
    %302 = vmatpush1.msra.mxu0 0.0
    %303 = vmatprep.subr.mxu0 0.0
    %304 = vmatpush1.msra.mxu0 0.0
    %305 = vmatprep.subr.mxu0 0.0
    %306 = vmatpush1.msra.mxu0 0.0
    %307 = vmatprep.subr.mxu0 0.0
    %308 = vmatpush1.msra.mxu0 0.0
    %309 = vmatprep.subr.mxu0 0.0
    %310 = vmatpush1.msra.mxu0 0.0
    %311 = vmatprep.subr.mxu0 0.0
    %312 = vmatpush1.msra.mxu0 0.0
    %313 = vmatprep.subr.mxu0 0.0
    %314 = vmatpush1.msra.mxu0 0.0
    %315 = vmatprep.subr.mxu0 0.0
    %316 = vmatpush1.msra.mxu0 0.0
    %317 = vmatprep.subr.mxu0 0.0
    %318 = vmatpush1.msra.mxu0 0.0
    %319 = vmatprep.subr.mxu0 0.0
    %320 = vmatpush1.msra.mxu0 0.0
    %321 = vmatprep.subr.mxu0 0.0
    %322 = vmatpush1.msra.mxu0 0.0
    %323 = vmatprep.subr.mxu0 0.0
    %324 = vmatpush1.msra.mxu0 0.0
    %325 = vmatprep.subr.mxu0 0.0
    %326 = vmatpush1.msra.mxu0 0.0
    %327 = vmatprep.subr.mxu0 0.0
    %328 = vmatpush1.msra.mxu0 0.0
    %329 = vmatprep.subr.mxu0 0.0
    %330 = vmatpush1.msra.mxu0 0.0
    %331 = vmatprep.mubr.f32.mxu0 0.0
    %332 = vmatmul.mubr.f32.gmra.mrb[0].mxu0 %v243
    %v333 = vpop.f32.mrb[0].mxu0
    %v334 = vadd.f32 %v265, %v333
    %v335 = vpop.f32.mrb[0].mxu0
    %336 = vdwg.mxu0
    %v337 = vmax.f32 %v334, 0.0
    %338 = vst [vmem:[#allocation10] sm:$0xff] %v337
    // Predicated region
    $region46: #{tpu_custom_call.1} parent=1 // pred_check
      _
    $region47: #{tpu_custom_call.1} parent=1 // pred_check_branch
      %340 = sbr.rel (0) target = $region49
    $region48: #{tpu_custom_call.1} parent=1 // pred_region
      %s342 = ssub.s32 128, 128
      %343 = vsyncadd [#allocation4], %s342
      %s345 = sshll.u32 [#allocation10], 4
      %s346 = int_to_ptr.vmem [resolvable:$true] %s345
      %348 = dma.vmem_to_hbm [thread:$0]  %s346, 128, %s7, [#allocation4]
    $region49: #{tpu_custom_call.1} parent=1 // pred_fallthru
      _
    // Predicated region
    $region50: #{tpu_custom_call.1} parent=1 // pred_check
      _
    $region51: #{tpu_custom_call.1} parent=1 // pred_check_branch
      %350 = sbr.rel (0) target = $region53
    $region52: #{tpu_custom_call.1} parent=1 // pred_region
      %351 = dma.done [#allocation4], 128
    $region53: #{tpu_custom_call.1} parent=1 // pred_fallthru
      _
    %352 = vsyncpa [#allocation3], 1
    %353 = vsyncpa [#allocation6], 1
    %354 = vsyncpa [#allocation9], 1
    %355 = vsyncpa [#allocation4], 1

</llo_original>
